<compile_context>
chip_gen: v5e
topology: v5e:2x2
jax: 0.10.0
libtpu: 0.0.40
codegen_flags: <defaults>
</compile_context>

<pallas_src>
import jax
import jax.numpy as jnp
from jax.experimental import pallas as pl
from jax.experimental.pallas import tpu as pltpu

# ---- model hyper-parameters (small shapes consistent with the module's forward) ----
HIDDEN = 32          # hidden_num
D_RES = 128          # embedding_number_resnet
D_VGG = 256          # embedding_number_vgg
D_IN = D_RES + D_VGG
OUT = 2
H_PAD = 128          # lane-dense padded hidden/concat width (2*HIDDEN=64 -> 128)
OUT_PAD = 128        # lane-dense padded output width
BATCH = 8
MAX_BATCH_BLOCK = 2048   # ~7 MiB/step double-buffered: fits v5e 16 MiB scoped default


def _round_up(x, m):
    return (x + m - 1) // m * m


def mixture_kernel(x_ref, wbd_ref, b0_ref, w1_ref, b1_ref, o_ref):
    # In-kernel f32 -> bf16 cast (no separate XLA pass over x in HBM).
    x_bf = x_ref[...].astype(jnp.bfloat16)                       # [TB, D_IN]

    # Fused branch matmul: block-diagonal weight folds fc_resnet & fc_vgg into one GEMM.
    h = jnp.dot(x_bf, wbd_ref[...], preferred_element_type=jnp.float32)
    h = jnp.maximum(h + b0_ref[...], 0.0)                        # [TB, H_PAD] f32, lane-dense

    # fc1 over the (implicit, zero-padded) concat; output padded to 128 lanes.
    out = jnp.dot(h.astype(jnp.bfloat16), w1_ref[...],
                  preferred_element_type=jnp.float32) + b1_ref[...]
    o_ref[...] = out.astype(o_ref.dtype)                         # [TB, OUT_PAD] bf16 slab


def mixture_model_forward(x, params, *, core_parallel=False):
    """core_parallel=True: on v7x (2 TCs/chip) shard the batch grid across cores."""
    wr, br, wv, bv, w1, b1 = params
    B = x.shape[0]

    # --- fused / padded parameter tensors (built wrapper-side, traced once) ---
    # block-diagonal first-layer weight, padded to 128 lanes: [D_IN, H_PAD]
    w_bd = jnp.zeros((D_IN, H_PAD), jnp.float32)
    w_bd = w_bd.at[:D_RES, :HIDDEN].set(wr.T)
    w_bd = w_bd.at[D_RES:, HIDDEN:2 * HIDDEN].set(wv.T)
    b0 = jnp.zeros((1, H_PAD), jnp.float32)
    b0 = b0.at[0, :HIDDEN].set(br).at[0, HIDDEN:2 * HIDDEN].set(bv)

    # fc1 weight/bias zero-padded to a lane-dense 128x128 slab
    w1_pad = jnp.zeros((H_PAD, OUT_PAD), jnp.float32).at[:2 * HIDDEN, :OUT].set(w1.T)
    b1_pad = jnp.zeros((1, OUT_PAD), jnp.float32).at[:, :OUT].set(b1)

    # bf16 matmul weights (f32 accumulate inside the kernel); x stays f32 (cast in-kernel)
    w_bd = w_bd.astype(jnp.bfloat16)
    w1_pad = w1_pad.astype(jnp.bfloat16)

    # --- batch tiling: sublane-aligned tb, cdiv grid (ragged tail handled by Pallas) ---
    if B <= 256:
        tb = _round_up(B, 8)                                  # single small tile
    else:
        # >= 2 grid steps so both v7x TensorCores get work; cap at MAX_BATCH_BLOCK.
        tb = min(MAX_BATCH_BLOCK, _round_up(pl.cdiv(B, 2), 8))
    grid = (pl.cdiv(B, tb),)

    if core_parallel and grid[0] >= 2:
        dims = (pltpu.CORE_PARALLEL,)     # v7x: split batch grid across the 2 TCs
    else:
        dims = ("parallel",)              # safe everywhere (and with a single step)

    out_pad = pl.pallas_call(
        mixture_kernel,
        out_shape=jax.ShapeDtypeStruct((B, OUT_PAD), jnp.bfloat16),
        grid=grid,
        in_specs=[
            pl.BlockSpec((tb, D_IN), lambda i: (i, 0)),          # x tile (f32)
            pl.BlockSpec((D_IN, H_PAD), lambda i: (0, 0)),       # W_bd   (VMEM-resident)
            pl.BlockSpec((1, H_PAD), lambda i: (0, 0)),          # bias0  (VMEM-resident)
            pl.BlockSpec((H_PAD, OUT_PAD), lambda i: (0, 0)),    # W1 pad (VMEM-resident)
            pl.BlockSpec((1, OUT_PAD), lambda i: (0, 0)),        # bias1  (VMEM-resident)
        ],
        out_specs=pl.BlockSpec((tb, OUT_PAD), lambda i: (i, 0)),
        compiler_params=pltpu.CompilerParams(dimension_semantics=dims),
    )(x, w_bd, b0, w1_pad, b1_pad)

    # Tiny slice of the lane-dense bf16 slab; cast back to f32 for the caller.
    return out_pad[:, :OUT].astype(jnp.float32)


def reference_forward(x, params):
    wr, br, wv, bv, w1, b1 = params
    h_res = jax.nn.relu(x[:, :D_RES] @ wr.T + br)
    h_vgg = jax.nn.relu(x[:, D_RES:] @ wv.T + bv)
    h = jnp.concatenate([h_res, h_vgg], axis=1)
    return h @ w1.T + b1


def init_params(key):
    ks = jax.random.split(key, 6)
    # deterministic, roughly PyTorch-Linear-scaled init
    wr = jax.random.uniform(ks[0], (HIDDEN, D_RES), jnp.float32, -1.0, 1.0) / jnp.sqrt(D_RES)
    br = jax.random.uniform(ks[1], (HIDDEN,), jnp.float32, -1.0, 1.0) / jnp.sqrt(D_RES)
    wv = jax.random.uniform(ks[2], (HIDDEN, D_VGG), jnp.float32, -1.0, 1.0) / jnp.sqrt(D_VGG)
    bv = jax.random.uniform(ks[3], (HIDDEN,), jnp.float32, -1.0, 1.0) / jnp.sqrt(D_VGG)
    w1 = jax.random.uniform(ks[4], (OUT, 2 * HIDDEN), jnp.float32, -1.0, 1.0) / jnp.sqrt(2 * HIDDEN)
    b1 = jax.random.uniform(ks[5], (OUT,), jnp.float32, -1.0, 1.0) / jnp.sqrt(2 * HIDDEN)
    return (wr, br, wv, bv, w1, b1)


if __name__ == "__main__":
    key = jax.random.PRNGKey(0)
    k_x, k_p = jax.random.split(key)
    x = jax.random.normal(k_x, (BATCH, D_IN), jnp.float32)
    params = init_params(k_p)

    out = mixture_model_forward(x, params)
    out = jax.block_until_ready(out)

    ref = reference_forward(x, params)
    assert out.shape == (BATCH, OUT)
    # bf16 matmul operands + bf16 output slab -> relaxed tolerance vs the f32 reference
    assert jnp.allclose(out, ref, atol=3e-2, rtol=3e-2), "mismatch vs reference"
    print("KERNEL_OK")
</pallas_src>

<mosaic_0001>
module attributes {stable_mosaic.version = 11 : i64} {
  func.func @mixture_kernel(%arg0: i32, %arg1: memref<8x384xf32, #tpu.memory_space<vmem>>, %arg2: memref<384x128xbf16, #tpu.memory_space<vmem>>, %arg3: memref<1x128xf32, #tpu.memory_space<vmem>>, %arg4: memref<128x128xbf16, #tpu.memory_space<vmem>>, %arg5: memref<1x128xf32, #tpu.memory_space<vmem>>, %arg6: memref<8x128xbf16, #tpu.memory_space<vmem>>) attributes {dimension_semantics = [#tpu.dimension_semantics<parallel>], iteration_bounds = array<i64: 1>, scalar_prefetch = 0 : i64, scratch_operands = 0 : i64, tpu.core_type = #tpu.core_type<tc>, window_params = [{transform_indices = @transform_0, window_bounds = array<i64: 8, 384>}, {pipeline_mode = #tpu.pipeline_mode<synchronous>, transform_indices = @transform_1, window_bounds = array<i64: 384, 128>}, {pipeline_mode = #tpu.pipeline_mode<synchronous>, transform_indices = @transform_2, window_bounds = array<i64: 1, 128>}, {pipeline_mode = #tpu.pipeline_mode<synchronous>, transform_indices = @transform_3, window_bounds = array<i64: 128, 128>}, {pipeline_mode = #tpu.pipeline_mode<synchronous>, transform_indices = @transform_4, window_bounds = array<i64: 1, 128>}, {transform_indices = @transform_5, window_bounds = array<i64: 8, 128>}]} {
    %c0 = arith.constant 0 : index
    %c0_0 = arith.constant 0 : index
    %0 = vector.load %arg1[%c0, %c0_0] : memref<8x384xf32, #tpu.memory_space<vmem>>, vector<8x384xf32>
    %1 = arith.truncf %0 : vector<8x384xf32> to vector<8x384xbf16>
    %c0_1 = arith.constant 0 : index
    %c0_2 = arith.constant 0 : index
    %2 = vector.load %arg2[%c0_1, %c0_2] : memref<384x128xbf16, #tpu.memory_space<vmem>>, vector<384x128xbf16>
    %cst = arith.constant dense<0.000000e+00> : vector<8x128xf32>
    %3 = tpu.matmul %1, %2, %cst {dimension_numbers = #tpu.dot_dimension_numbers<[1], [0], [0], [1], [0, 0, 1, 1], [], []>} : vector<8x384xbf16>, vector<384x128xbf16>, vector<8x128xf32> -> vector<8x128xf32>
    %c0_3 = arith.constant 0 : index
    %c0_4 = arith.constant 0 : index
    %4 = vector.load %arg3[%c0_3, %c0_4] : memref<1x128xf32, #tpu.memory_space<vmem>>, vector<1x128xf32>
    %5 = vector.broadcast %4 : vector<1x128xf32> to vector<8x128xf32>
    %6 = arith.addf %3, %5 : vector<8x128xf32>
    %cst_5 = arith.constant 0.000000e+00 : f32
    %7 = vector.broadcast %cst_5 : f32 to vector<8x128xf32>
    %8 = arith.maximumf %6, %7 : vector<8x128xf32>
    %9 = arith.truncf %8 : vector<8x128xf32> to vector<8x128xbf16>
    %c0_6 = arith.constant 0 : index
    %c0_7 = arith.constant 0 : index
    %10 = vector.load %arg4[%c0_6, %c0_7] : memref<128x128xbf16, #tpu.memory_space<vmem>>, vector<128x128xbf16>
    %cst_8 = arith.constant dense<0.000000e+00> : vector<8x128xf32>
    %11 = tpu.matmul %9, %10, %cst_8 {dimension_numbers = #tpu.dot_dimension_numbers<[1], [0], [0], [1], [0, 0, 1, 1], [], []>} : vector<8x128xbf16>, vector<128x128xbf16>, vector<8x128xf32> -> vector<8x128xf32>
    %c0_9 = arith.constant 0 : index
    %c0_10 = arith.constant 0 : index
    %12 = vector.load %arg5[%c0_9, %c0_10] : memref<1x128xf32, #tpu.memory_space<vmem>>, vector<1x128xf32>
    %13 = vector.broadcast %12 : vector<1x128xf32> to vector<8x128xf32>
    %14 = arith.addf %11, %13 : vector<8x128xf32>
    %15 = arith.truncf %14 : vector<8x128xf32> to vector<8x128xbf16>
    %c0_11 = arith.constant 0 : index
    %c0_12 = arith.constant 0 : index
    %16 = vector.load %arg6[%c0_11, %c0_12] : memref<8x128xbf16, #tpu.memory_space<vmem>>, vector<8x128xbf16>
    tpu.vector_store %arg6[%c0_11, %c0_12], %15 {strides = array<i32>} : memref<8x128xbf16, #tpu.memory_space<vmem>>, vector<8x128xbf16>,
    return
  }
  func.func @transform_0(%arg0: i32) -> (i32, i32) {
    %c0_i32 = arith.constant 0 : i32
    %c0_i32_0 = arith.constant 0 : i32
    return %arg0, %c0_i32 : i32, i32
  }
  func.func @transform_1(%arg0: i32) -> (i32, i32) {
    %c0_i32 = arith.constant 0 : i32
    %c0_i32_0 = arith.constant 0 : i32
    %c0_i32_1 = arith.constant 0 : i32
    return %c0_i32, %c0_i32_0 : i32, i32
  }
  func.func @transform_2(%arg0: i32) -> (i32, i32) {
    %c0_i32 = arith.constant 0 : i32
    %c0_i32_0 = arith.constant 0 : i32
    %c0_i32_1 = arith.constant 0 : i32
    return %c0_i32, %c0_i32_0 : i32, i32
  }
  func.func @transform_3(%arg0: i32) -> (i32, i32) {
    %c0_i32 = arith.constant 0 : i32
    %c0_i32_0 = arith.constant 0 : i32
    %c0_i32_1 = arith.constant 0 : i32
    return %c0_i32, %c0_i32_0 : i32, i32
  }
  func.func @transform_4(%arg0: i32) -> (i32, i32) {
    %c0_i32 = arith.constant 0 : i32
    %c0_i32_0 = arith.constant 0 : i32
    %c0_i32_1 = arith.constant 0 : i32
    return %c0_i32, %c0_i32_0 : i32, i32
  }
  func.func @transform_5(%arg0: i32) -> (i32, i32) {
    %c0_i32 = arith.constant 0 : i32
    %c0_i32_0 = arith.constant 0 : i32
    return %arg0, %c0_i32 : i32, i32
  }
}

</mosaic_0001>

<llo_original>
// kernel: tpu_custom_call.1
$region0: #{tpu_custom_call.1}
  #allocation0 [shape = 'u32[]', space=smem, size = 0x4, offset = 0x4, fixed_abs, tag = 'smem constant byte address 0x4 - core index']
  #allocation1 [shape = 'u32[72,128]{1,0:T(1,128)}', space=vmem, size = 0x9000, scoped, tag = 'internal scratch']
  %s0 = inlined_call_operand.hbm [shape: f32[8,384], index: 0, kind: input, shape index: {}]
  %s1 = inlined_call_operand.hbm [shape: bf16[384,128], index: 1, kind: input, shape index: {}]
  %s2 = inlined_call_operand.vmem [shape: f32[1,128], index: 2, kind: input, shape index: {}]
  %s3 = inlined_call_operand.hbm [shape: bf16[128,128], index: 3, kind: input, shape index: {}]
  %s4 = inlined_call_operand.vmem [shape: f32[1,128], index: 4, kind: input, shape index: {}]
  %s5 = inlined_call_operand.hbm [shape: bf16[8,128], index: 5, kind: output, shape index: {}]
  %s6 = sld [smem:[#allocation0]]
  $region42: #{tpu_custom_call.1} parent=0
    _
  %s8 = ssub.s32 1, %s6
  %s9 = scalar_select 0, %s8, %s6
  $region1: #{tpu_custom_call.1} parent=0
    #allocation2 [shape = 'u8[12288]{0}', space=vmem, size = 0x3000, scoped, tag = 'input window, operand 0, single buffered']
    #allocation3 [shape = 's32[1]{0}', space=sflag, size = 0x4, scoped, tag = 'scoped memory for tpu_custom_call.1']
    #allocation4 [shape = 's32[1]{0}', space=sflag, size = 0x4, scoped, tag = 'scoped memory for tpu_custom_call.1']
    #allocation5 [shape = 'u8[98304]{0}', space=vmem, size = 0x18000, scoped, tag = 'input window, operand 1, single buffered']
    #allocation6 [shape = 's32[1]{0}', space=sflag, size = 0x4, scoped, tag = 'scoped memory for tpu_custom_call.1']
    #allocation7 [shape = 'u8[32768]{0}', space=vmem, size = 0x8000, scoped, tag = 'input window, operand 3, single buffered']
    #allocation8 [shape = 'u8[2048]{0}', space=vmem, size = 0x800, scoped, tag = 'output window, operand 0, single buffered']
    %10 = vsyncpa [#allocation3], 0
    %11 = vsyncpa [#allocation6], 0
    %12 = vsyncpa [#allocation4], 0
    // Predicated region
    $region2: #{tpu_custom_call.1} parent=1 // pred_check
      _
    $region3: #{tpu_custom_call.1} parent=1 // pred_check_branch
      %14 = sbr.rel (0) target = $region5
    $region4: #{tpu_custom_call.1} parent=1 // pred_region
      %16 = vsyncadd [#allocation3], 0
      %s18 = sshll.u32 %s0, 4
      %s19 = int_to_ptr.hbm [resolvable:$true] %s18
      %s20 = sshll.u32 [#allocation2], 4
      %s21 = int_to_ptr.vmem [resolvable:$true] %s20
      %23 = dma.hbm_to_vmem [thread:$0]  %s19, 384, %s21, [#allocation3]
    $region5: #{tpu_custom_call.1} parent=1 // pred_fallthru
      _
    // Predicated region
    $region6: #{tpu_custom_call.1} parent=1 // pred_check
      _
    $region7: #{tpu_custom_call.1} parent=1 // pred_check_branch
      %25 = sbr.rel (0) target = $region9
    $region8: #{tpu_custom_call.1} parent=1 // pred_region
      %27 = vsyncadd [#allocation6], 0
      %s28 = sshll.u32 %s1, 4
      %s29 = int_to_ptr.hbm [resolvable:$true] %s28
      %s30 = sshll.u32 [#allocation5], 4
      %s31 = int_to_ptr.vmem [resolvable:$true] %s30
      %36 = dma.hbm_to_vmem [thread:$0]  %s29, 3072, %s31, [#allocation6], 64, 64, 4
    $region9: #{tpu_custom_call.1} parent=1 // pred_fallthru
      _
    // Predicated region
    $region10: #{tpu_custom_call.1} parent=1 // pred_check
      _
    $region11: #{tpu_custom_call.1} parent=1 // pred_check_branch
      %38 = sbr.rel (0) target = $region13
    $region12: #{tpu_custom_call.1} parent=1 // pred_region
      _
    $region13: #{tpu_custom_call.1} parent=1 // pred_fallthru
      _
    // Predicated region
    $region14: #{tpu_custom_call.1} parent=1 // pred_check
      _
    $region15: #{tpu_custom_call.1} parent=1 // pred_check_branch
      %40 = sbr.rel (0) target = $region17
    $region16: #{tpu_custom_call.1} parent=1 // pred_region
      %42 = vsyncadd [#allocation6], 0
      %s43 = sshll.u32 %s3, 4
      %s44 = int_to_ptr.hbm [resolvable:$true] %s43
      %s45 = sshll.u32 [#allocation7], 4
      %s46 = int_to_ptr.vmem [resolvable:$true] %s45
      %51 = dma.hbm_to_vmem [thread:$0]  %s44, 1024, %s46, [#allocation6], 64, 64, 4
    $region17: #{tpu_custom_call.1} parent=1 // pred_fallthru
      _
    // Predicated region
    $region18: #{tpu_custom_call.1} parent=1 // pred_check
      _
    $region19: #{tpu_custom_call.1} parent=1 // pred_check_branch
      %53 = sbr.rel (0) target = $region21
    $region20: #{tpu_custom_call.1} parent=1 // pred_region
      _
    $region21: #{tpu_custom_call.1} parent=1 // pred_fallthru
      _
    // Predicated region
    $region22: #{tpu_custom_call.1} parent=1 // pred_check
      _
    $region23: #{tpu_custom_call.1} parent=1 // pred_check_branch
      %55 = sbr.rel (0) target = $region25
    $region24: #{tpu_custom_call.1} parent=1 // pred_region
      %57 = dma.done [#allocation3], 384
    $region25: #{tpu_custom_call.1} parent=1 // pred_fallthru
      _
    // Predicated region
    $region26: #{tpu_custom_call.1} parent=1 // pred_check
      _
    $region27: #{tpu_custom_call.1} parent=1 // pred_check_branch
      %59 = sbr.rel (0) target = $region29
    $region28: #{tpu_custom_call.1} parent=1 // pred_region
      %61 = dma.done [#allocation6], 3072
    $region29: #{tpu_custom_call.1} parent=1 // pred_fallthru
      _
    // Predicated region
    $region30: #{tpu_custom_call.1} parent=1 // pred_check
      _
    $region31: #{tpu_custom_call.1} parent=1 // pred_check_branch
      %63 = sbr.rel (0) target = $region33
    $region32: #{tpu_custom_call.1} parent=1 // pred_region
      %65 = dma.done [#allocation6], 1024
    $region33: #{tpu_custom_call.1} parent=1 // pred_fallthru
      _
    %v66 = vld [vmem:[#allocation2] sm:$0xff]
    %v67 = vld [vmem:[#allocation2 + $0x8] sm:$0xff]
    %v68 = vld [vmem:[#allocation2 + $0x10] sm:$0xff]
    %v69 = vpack.c.bf16 %v66, %v66
    %v70 = vpack.c.bf16 %v67, %v67
    %v71 = vpack.c.bf16 %v68, %v68
    %v72 = vld [vmem:[#allocation5] sm:$0xf]
    %v73 = vld [vmem:[#allocation5 + $0x4] sm:$0xf]
    %v74 = vld [vmem:[#allocation5 + $0x8] sm:$0xf]
    %v75 = vld [vmem:[#allocation5 + $0xc] sm:$0xf]
    %v76 = vld [vmem:[#allocation5 + $0x10] sm:$0xf]
    %v77 = vld [vmem:[#allocation5 + $0x14] sm:$0xf]
    %v78 = vld [vmem:[#allocation5 + $0x18] sm:$0xf]
    %v79 = vld [vmem:[#allocation5 + $0x1c] sm:$0xf]
    %v80 = vld [vmem:[#allocation5 + $0x20] sm:$0xf]
    %v81 = vld [vmem:[#allocation5 + $0x24] sm:$0xf]
    %v82 = vld [vmem:[#allocation5 + $0x28] sm:$0xf]
    %v83 = vld [vmem:[#allocation5 + $0x2c] sm:$0xf]
    %v84 = vld [vmem:[#allocation5 + $0x30] sm:$0xf]
    %v85 = vld [vmem:[#allocation5 + $0x34] sm:$0xf]
    %v86 = vld [vmem:[#allocation5 + $0x38] sm:$0xf]
    %v87 = vld [vmem:[#allocation5 + $0x3c] sm:$0xf]
    %v88 = vld [vmem:[#allocation5 + $0x40] sm:$0xf]
    %v89 = vld [vmem:[#allocation5 + $0x44] sm:$0xf]
    %v90 = vld [vmem:[#allocation5 + $0x48] sm:$0xf]
    %v91 = vld [vmem:[#allocation5 + $0x4c] sm:$0xf]
    %v92 = vld [vmem:[#allocation5 + $0x50] sm:$0xf]
    %v93 = vld [vmem:[#allocation5 + $0x54] sm:$0xf]
    %v94 = vld [vmem:[#allocation5 + $0x58] sm:$0xf]
    %v95 = vld [vmem:[#allocation5 + $0x5c] sm:$0xf]
    %v96 = vld [vmem:[#allocation5 + $0x60] sm:$0xf]
    %v97 = vld [vmem:[#allocation5 + $0x64] sm:$0xf]
    %v98 = vld [vmem:[#allocation5 + $0x68] sm:$0xf]
    %v99 = vld [vmem:[#allocation5 + $0x6c] sm:$0xf]
    %v100 = vld [vmem:[#allocation5 + $0x70] sm:$0xf]
    %v101 = vld [vmem:[#allocation5 + $0x74] sm:$0xf]
    %v102 = vld [vmem:[#allocation5 + $0x78] sm:$0xf]
    %v103 = vld [vmem:[#allocation5 + $0x7c] sm:$0xf]
    %v104 = vld [vmem:[#allocation5 + $0x80] sm:$0xf]
    %v105 = vld [vmem:[#allocation5 + $0x84] sm:$0xf]
    %v106 = vld [vmem:[#allocation5 + $0x88] sm:$0xf]
    %v107 = vld [vmem:[#allocation5 + $0x8c] sm:$0xf]
    %v108 = vld [vmem:[#allocation5 + $0x90] sm:$0xf]
    %v109 = vld [vmem:[#allocation5 + $0x94] sm:$0xf]
    %v110 = vld [vmem:[#allocation5 + $0x98] sm:$0xf]
    %v111 = vld [vmem:[#allocation5 + $0x9c] sm:$0xf]
    %v112 = vld [vmem:[#allocation5 + $0xa0] sm:$0xf]
    %v113 = vld [vmem:[#allocation5 + $0xa4] sm:$0xf]
    %v114 = vld [vmem:[#allocation5 + $0xa8] sm:$0xf]
    %v115 = vld [vmem:[#allocation5 + $0xac] sm:$0xf]
    %v116 = vld [vmem:[#allocation5 + $0xb0] sm:$0xf]
    %v117 = vld [vmem:[#allocation5 + $0xb4] sm:$0xf]
    %v118 = vld [vmem:[#allocation5 + $0xb8] sm:$0xf]
    %v119 = vld [vmem:[#allocation5 + $0xbc] sm:$0xf]
    %v120 = vld [vmem:[%s2] sm:$0x1]
    %v122 = vperm.slane %v120, 0
    %v172 = vunpack.c.l.b16 %v72
    %v173 = vunpack.c.l.b16 %v73
    %v174 = vunpack.c.l.b16 %v74
    %v175 = vunpack.c.l.b16 %v75
    %v176 = vunpack.c.l.b16 %v76
    %v177 = vunpack.c.l.b16 %v77
    %v178 = vunpack.c.l.b16 %v78
    %v179 = vunpack.c.l.b16 %v79
    %v180 = vunpack.c.l.b16 %v80
    %v181 = vunpack.c.l.b16 %v81
    %v182 = vunpack.c.l.b16 %v82
    %v183 = vunpack.c.l.b16 %v83
    %v184 = vunpack.c.l.b16 %v84
    %v185 = vunpack.c.l.b16 %v85
    %v186 = vunpack.c.l.b16 %v86
    %v187 = vunpack.c.l.b16 %v87
    %v188 = vunpack.c.l.b16 %v88
    %v189 = vunpack.c.l.b16 %v89
    %v190 = vunpack.c.l.b16 %v90
    %v191 = vunpack.c.l.b16 %v91
    %v192 = vunpack.c.l.b16 %v92
    %v193 = vunpack.c.l.b16 %v93
    %v194 = vunpack.c.l.b16 %v94
    %v195 = vunpack.c.l.b16 %v95
    %v196 = vunpack.c.l.b16 %v96
    %v197 = vunpack.c.l.b16 %v97
    %v198 = vunpack.c.l.b16 %v98
    %v199 = vunpack.c.l.b16 %v99
    %v200 = vunpack.c.l.b16 %v100
    %v201 = vunpack.c.l.b16 %v101
    %v202 = vunpack.c.l.b16 %v102
    %v203 = vunpack.c.l.b16 %v103
    %v204 = vunpack.c.l.b16 %v104
    %v205 = vunpack.c.l.b16 %v105
    %v206 = vunpack.c.l.b16 %v106
    %v207 = vunpack.c.l.b16 %v107
    %v208 = vunpack.c.l.b16 %v108
    %v209 = vunpack.c.l.b16 %v109
    %v210 = vunpack.c.l.b16 %v110
    %v211 = vunpack.c.l.b16 %v111
    %v212 = vunpack.c.l.b16 %v112
    %v213 = vunpack.c.l.b16 %v113
    %v214 = vunpack.c.l.b16 %v114
    %v215 = vunpack.c.l.b16 %v115
    %v216 = vunpack.c.l.b16 %v116
    %v217 = vunpack.c.l.b16 %v117
    %v218 = vunpack.c.l.b16 %v118
    %v219 = vunpack.c.l.b16 %v119
    %v220 = vpack.c.b16 %v173, %v172
    %v221 = vpack.c.b16 %v175, %v174
    %v222 = vpack.c.b16 %v177, %v176
    %v223 = vpack.c.b16 %v179, %v178
    %v224 = vpack.c.b16 %v181, %v180
    %v225 = vpack.c.b16 %v183, %v182
    %v226 = vpack.c.b16 %v185, %v184
    %v227 = vpack.c.b16 %v187, %v186
    %v228 = vpack.c.b16 %v189, %v188
    %v229 = vpack.c.b16 %v191, %v190
    %v230 = vpack.c.b16 %v193, %v192
    %v231 = vpack.c.b16 %v195, %v194
    %v232 = vpack.c.b16 %v197, %v196
    %v233 = vpack.c.b16 %v199, %v198
    %v234 = vpack.c.b16 %v201, %v200
    %v235 = vpack.c.b16 %v203, %v202
    %v236 = vpack.c.b16 %v205, %v204
    %v237 = vpack.c.b16 %v207, %v206
    %v238 = vpack.c.b16 %v209, %v208
    %v239 = vpack.c.b16 %v211, %v210
    %v240 = vpack.c.b16 %v213, %v212
    %v241 = vpack.c.b16 %v215, %v214
    %v242 = vpack.c.b16 %v217, %v216
    %v243 = vpack.c.b16 %v219, %v218
    %268 = vmatpush.bf16.msra.mxu0 %v227
    %269 = vmatpush.bf16.msra.mxu0 %v226
    %270 = vmatpush.bf16.msra.mxu0 %v225
    %271 = vmatpush.bf16.msra.mxu0 %v224
    %272 = vmatpush.bf16.msra.mxu0 %v223
    %273 = vmatpush.bf16.msra.mxu0 %v222
    %274 = vmatpush.bf16.msra.mxu0 %v221
    %275 = vmatpush.bf16.msra.mxu0 %v220
    %276 = vmatmul.bf16.gmra.mxu0 %v69
    %v277 = vpop.f32.mrf.mxu0
    %v278 = vadd.f32 %v122, %v277
    %v279 = vpop.f32.mrf.mxu0
    %280 = vdwg.mxu0
    %281 = vmatpush.bf16.msra.mxu0 %v235
    %282 = vmatpush.bf16.msra.mxu0 %v234
    %283 = vmatpush.bf16.msra.mxu0 %v233
    %284 = vmatpush.bf16.msra.mxu0 %v232
    %285 = vmatpush.bf16.msra.mxu0 %v231
    %286 = vmatpush.bf16.msra.mxu0 %v230
    %287 = vmatpush.bf16.msra.mxu0 %v229
    %288 = vmatpush.bf16.msra.mxu0 %v228
    %289 = vmatmul.bf16.gmra.mxu0 %v70
    %v290 = vpop.f32.mrf.mxu0
    %v291 = vadd.f32 %v278, %v290
    %v292 = vpop.f32.mrf.mxu0
    %293 = vdwg.mxu0
    %294 = vmatpush.bf16.msra.mxu0 %v243
    %295 = vmatpush.bf16.msra.mxu0 %v242
    %296 = vmatpush.bf16.msra.mxu0 %v241
    %297 = vmatpush.bf16.msra.mxu0 %v240
    %298 = vmatpush.bf16.msra.mxu0 %v239
    %299 = vmatpush.bf16.msra.mxu0 %v238
    %300 = vmatpush.bf16.msra.mxu0 %v237
    %301 = vmatpush.bf16.msra.mxu0 %v236
    %302 = vmatmul.bf16.gmra.mxu0 %v71
    %v303 = vpop.f32.mrf.mxu0
    %v304 = vadd.f32 %v291, %v303
    %v305 = vpop.f32.mrf.mxu0
    %306 = vdwg.mxu0
    %v307 = vmax.f32 %v304, 0.0
    %v308 = vpack.c.bf16 %v307, %v307
    %v309 = vld [vmem:[#allocation7] sm:$0xf]
    %v310 = vld [vmem:[#allocation7 + $0x4] sm:$0xf]
    %v311 = vld [vmem:[#allocation7 + $0x8] sm:$0xf]
    %v312 = vld [vmem:[#allocation7 + $0xc] sm:$0xf]
    %v313 = vld [vmem:[#allocation7 + $0x10] sm:$0xf]
    %v314 = vld [vmem:[#allocation7 + $0x14] sm:$0xf]
    %v315 = vld [vmem:[#allocation7 + $0x18] sm:$0xf]
    %v316 = vld [vmem:[#allocation7 + $0x1c] sm:$0xf]
    %v317 = vld [vmem:[#allocation7 + $0x20] sm:$0xf]
    %v318 = vld [vmem:[#allocation7 + $0x24] sm:$0xf]
    %v319 = vld [vmem:[#allocation7 + $0x28] sm:$0xf]
    %v320 = vld [vmem:[#allocation7 + $0x2c] sm:$0xf]
    %v321 = vld [vmem:[#allocation7 + $0x30] sm:$0xf]
    %v322 = vld [vmem:[#allocation7 + $0x34] sm:$0xf]
    %v323 = vld [vmem:[#allocation7 + $0x38] sm:$0xf]
    %v324 = vld [vmem:[#allocation7 + $0x3c] sm:$0xf]
    %v325 = vld [vmem:[%s4] sm:$0x1]
    %v327 = vperm.slane %v325, 0
    %v345 = vunpack.c.l.b16 %v309
    %v346 = vunpack.c.l.b16 %v310
    %v347 = vunpack.c.l.b16 %v311
    %v348 = vunpack.c.l.b16 %v312
    %v349 = vunpack.c.l.b16 %v313
    %v350 = vunpack.c.l.b16 %v314
    %v351 = vunpack.c.l.b16 %v315
    %v352 = vunpack.c.l.b16 %v316
    %v353 = vunpack.c.l.b16 %v317
    %v354 = vunpack.c.l.b16 %v318
    %v355 = vunpack.c.l.b16 %v319
    %v356 = vunpack.c.l.b16 %v320
    %v357 = vunpack.c.l.b16 %v321
    %v358 = vunpack.c.l.b16 %v322
    %v359 = vunpack.c.l.b16 %v323
    %v360 = vunpack.c.l.b16 %v324
    %v361 = vpack.c.b16 %v346, %v345
    %v362 = vpack.c.b16 %v348, %v347
    %v363 = vpack.c.b16 %v350, %v349
    %v364 = vpack.c.b16 %v352, %v351
    %v365 = vpack.c.b16 %v354, %v353
    %v366 = vpack.c.b16 %v356, %v355
    %v367 = vpack.c.b16 %v358, %v357
    %v368 = vpack.c.b16 %v360, %v359
    %377 = vmatpush.bf16.msra.mxu0 %v368
    %378 = vmatpush.bf16.msra.mxu0 %v367
    %379 = vmatpush.bf16.msra.mxu0 %v366
    %380 = vmatpush.bf16.msra.mxu0 %v365
    %381 = vmatpush.bf16.msra.mxu0 %v364
    %382 = vmatpush.bf16.msra.mxu0 %v363
    %383 = vmatpush.bf16.msra.mxu0 %v362
    %384 = vmatpush.bf16.msra.mxu0 %v361
    %385 = vmatmul.bf16.gmra.mxu0 %v308
    %v386 = vpop.f32.mrf.mxu0
    %v387 = vadd.f32 %v327, %v386
    %v388 = vpop.f32.mrf.mxu0
    %389 = vdwg.mxu0
    %v390 = vpack.c.bf16 %v387, %v387
    %391 = vst [vmem:[#allocation8] sm:$0xf] %v390
    // Predicated region
    $region34: #{tpu_custom_call.1} parent=1 // pred_check
      _
    $region35: #{tpu_custom_call.1} parent=1 // pred_check_branch
      %393 = sbr.rel (0) target = $region37
    $region36: #{tpu_custom_call.1} parent=1 // pred_region
      %395 = vsyncadd [#allocation4], 0
      %s397 = sshll.u32 [#allocation8], 4
      %s398 = int_to_ptr.vmem [resolvable:$true] %s397
      %s399 = sshll.u32 %s5, 4
      %s400 = int_to_ptr.hbm [resolvable:$true] %s399
      %402 = dma.vmem_to_hbm [thread:$0]  %s398, 64, %s400, [#allocation4]
    $region37: #{tpu_custom_call.1} parent=1 // pred_fallthru
      _
    // Predicated region
    $region38: #{tpu_custom_call.1} parent=1 // pred_check
      _
    $region39: #{tpu_custom_call.1} parent=1 // pred_check_branch
      %404 = sbr.rel (0) target = $region41
    $region40: #{tpu_custom_call.1} parent=1 // pred_region
      %406 = dma.done [#allocation4], 64
    $region41: #{tpu_custom_call.1} parent=1 // pred_fallthru
      _
    %407 = vsyncpa [#allocation3], 1
    %408 = vsyncpa [#allocation6], 1
    %409 = vsyncpa [#allocation4], 1

</llo_original>
